<compile_context>
chip_gen: v6e
topology: v6e:2x2x1
jax: 0.10.0
libtpu: 0.0.40
codegen_flags: <defaults>
</compile_context>

<pallas_src>
import jax
import jax.numpy as jnp
from jax.experimental import pallas as pl
from jax.experimental.pallas import tpu as pltpu


def _message_kernel(order_ref, x_ref, w_ref, o_ref):
    """Gather + scale for a block of TE edges.

    order_ref : (TE, K) int32   gather indices into the per-edge src slab.
    x_ref     : (TE, N, D)      per-edge source-node embeddings.
    w_ref     : (TE, K)         per-message edge weights.
    o_ref     : (TE, K, D)      gathered & scaled messages.
    """
    te, n, _ = x_ref.shape
    k = order_ref.shape[1]

    # Clamp indices so OOB values (or garbage rows of a masked partial block)
    # can never address stale VMEM.  (PyTorch index_select would raise; here we
    # clamp — see correctness note in the wrapper docstring.)
    idx = jnp.clip(order_ref[...], 0, n - 1)                      # (TE, K)

    # One-hot gather matrix with the edge-weight scale folded in.  The whole
    # gather + multiply becomes a single batched MXU matmul.
    iota = jax.lax.broadcasted_iota(jnp.int32, (te, k, n), 2)     # (TE, K, N)
    sel = jnp.where(iota == idx[:, :, None],
                    w_ref[...][:, :, None].astype(x_ref.dtype),
                    jnp.zeros((), x_ref.dtype))                   # (TE, K, N)

    out = jnp.einsum('ekn,end->ekd', sel, x_ref[...],
                     preferred_element_type=jnp.float32)          # (TE, K, D)
    o_ref[...] = out.astype(o_ref.dtype)                          # single lane-dense store


def message_func_forward(feat_src, order_info, edge_weight, *, edges_per_step=None):
    """Equivalent of MessageFunc.forward.

    feat_src    : (E, N, D) float   -- edges.src['embedding']
    order_info  : (E, K)    int     -- self.orderInfo, values in [0, N)
    edge_weight : (E*K, 1)  float   -- edges.data['_edge_weight']
    returns     : (E*K, D)  float   -- message 'm'
    """
    E, N, D = feat_src.shape
    K = order_info.shape[1]
    itemsize = jnp.dtype(feat_src.dtype).itemsize

    order_info = order_info.astype(jnp.int32)
    w = edge_weight.reshape(E, K)                       # dense 2-D weights, no dtype cast

    # --- Pick TE (edges per grid step) -------------------------------------
    if edges_per_step is None:
        target_out_bytes = 1 << 20                      # ~1 MiB of output per step
        te = max(1, target_out_bytes // max(1, K * D * itemsize))
        per_edge_bytes = ((N * D + K * D) * itemsize
                          + K * (4 + jnp.dtype(edge_weight.dtype).itemsize))
        vmem_budget = 24 << 20                          # double-buffered working set cap
        te = min(te, max(1, vmem_budget // (2 * per_edge_bytes)))
        te = min(te, E)
    else:
        te = min(edges_per_step, E)
    if te < E:
        # Keep the 2-D (TE, K) blocks sublane-dense: TE must be a multiple of 8
        # (or equal to the full E extent).
        te = max(8, (te // 8) * 8)
        te = min(te, E)

    grid = (pl.cdiv(E, te),)

    cost = pl.CostEstimate(
        flops=2 * E * K * N * D,                        # one-hot gather matmul
        transcendentals=0,
        bytes_accessed=(E * N * D + E * K * D) * itemsize
                       + E * K * (4 + jnp.dtype(edge_weight.dtype).itemsize))

    out = pl.pallas_call(
        _message_kernel,
        out_shape=jax.ShapeDtypeStruct((E, K, D), feat_src.dtype),
        grid_spec=pltpu.PrefetchScalarGridSpec(
            num_scalar_prefetch=0,
            grid=grid,
            in_specs=[
                pl.BlockSpec((te, K), lambda i: (i, 0)),        # gather indices
                pl.BlockSpec((te, N, D), lambda i: (i, 0, 0)),  # feat_src slab
                pl.BlockSpec((te, K), lambda i: (i, 0)),        # edge weights
            ],
            out_specs=pl.BlockSpec((te, K, D), lambda i: (i, 0, 0)),
        ),
        compiler_params=pltpu.CompilerParams(
            dimension_semantics=("parallel",),
            vmem_limit_bytes=32 * 1024 * 1024,
        ),
        cost_estimate=cost,
    )(order_info, feat_src, w)

    return out.reshape(E * K, D)


if __name__ == "__main__":
    # Small shapes consistent with the module: E edges, N source nodes per edge,
    # K gathered messages per edge, D-dim embeddings (lane-dense: D % 128 == 0).
    E, N, K, D = 4, 16, 8, 128

    key = jax.random.PRNGKey(0)
    k1, k2, k3 = jax.random.split(key, 3)
    feat_src = jax.random.normal(k1, (E, N, D), jnp.float32)
    order_info = jax.random.randint(k2, (E, K), 0, N, dtype=jnp.int32)
    edge_weight = jax.random.uniform(k3, (E * K, 1), jnp.float32)

    out = message_func_forward(feat_src, order_info, edge_weight)
    out = jax.block_until_ready(out)

    # Pure-JAX reference mirroring the PyTorch module.
    ref = jnp.take_along_axis(feat_src, order_info[:, :, None], axis=1)  # (E, K, D)
    ref = ref.reshape(E * K, D) * edge_weight

    assert out.shape == (E * K, D), out.shape
    assert bool(jnp.all(jnp.isfinite(out)))
    assert bool(jnp.allclose(out, ref, atol=1e-5, rtol=1e-5)), \
        float(jnp.max(jnp.abs(out - ref)))
    print("KERNEL_OK")
</pallas_src>

<mosaic_0001>
module attributes {stable_mosaic.version = 11 : i64} {
  func.func @_message_kernel(%arg0: i32, %arg1: memref<4x8xi32, #tpu.memory_space<vmem>>, %arg2: memref<4x16x128xf32, #tpu.memory_space<vmem>>, %arg3: memref<4x8xf32, #tpu.memory_space<vmem>>, %arg4: memref<4x8x128xf32, #tpu.memory_space<vmem>>) attributes {dimension_semantics = [#tpu.dimension_semantics<parallel>], iteration_bounds = array<i64: 1>, scalar_prefetch = 0 : i64, scratch_operands = 0 : i64, tpu.core_type = #tpu.core_type<tc>, window_params = [{transform_indices = @transform_0, window_bounds = array<i64: 4, 8>}, {transform_indices = @transform_1, window_bounds = array<i64: 4, 16, 128>}, {transform_indices = @transform_2, window_bounds = array<i64: 4, 8>}, {transform_indices = @transform_3, window_bounds = array<i64: 4, 8, 128>}]} {
    %c0 = arith.constant 0 : index
    %c0_0 = arith.constant 0 : index
    %0 = vector.load %arg1[%c0, %c0_0] : memref<4x8xi32, #tpu.memory_space<vmem>>, vector<4x8xi32>
    %c0_i32 = arith.constant 0 : i32
    %c15_i32 = arith.constant 15 : i32
    %1 = vector.broadcast %c0_i32 : i32 to vector<4x8xi32>
    %2 = arith.maxsi %1, %0 : vector<4x8xi32>
    %3 = vector.broadcast %c15_i32 : i32 to vector<4x8xi32>
    %4 = arith.minsi %3, %2 : vector<4x8xi32>
    %5 = tpu.iota {dimensions = array<i32: 2>} : vector<4x8x16xi32>
    %6 = vector.shape_cast %4 : vector<4x8xi32> to vector<4x8x1xi32>
    %7 = vector.broadcast %6 : vector<4x8x1xi32> to vector<4x8x16xi32>
    %8 = arith.cmpi eq, %5, %7 : vector<4x8x16xi32>
    %c0_1 = arith.constant 0 : index
    %c0_2 = arith.constant 0 : index
    %9 = vector.load %arg3[%c0_1, %c0_2] : memref<4x8xf32, #tpu.memory_space<vmem>>, vector<4x8xf32>
    %10 = vector.shape_cast %9 : vector<4x8xf32> to vector<4x8x1xf32>
    %cst = arith.constant 0.000000e+00 : f32
    %11 = vector.shape_cast %10 : vector<4x8x1xf32> to vector<4x8x1xf32>
    %12 = vector.broadcast %11 : vector<4x8x1xf32> to vector<4x8x16xf32>
    %13 = vector.broadcast %cst : f32 to vector<4x8x16xf32>
    %14 = arith.select %8, %12, %13 : vector<4x8x16xi1>, vector<4x8x16xf32>
    %c0_3 = arith.constant 0 : index
    %c0_4 = arith.constant 0 : index
    %c0_5 = arith.constant 0 : index
    %15 = vector.load %arg2[%c0_3, %c0_4, %c0_5] : memref<4x16x128xf32, #tpu.memory_space<vmem>>, vector<4x16x128xf32>
    "tpu.trace_start"() <{level = 10 : i32, message = "ekn,end->ekd"}> : () -> ()
    %cst_6 = arith.constant dense<0.000000e+00> : vector<4x8x128xf32>
    %16 = tpu.matmul %14, %15, %cst_6 {dimension_numbers = #tpu.dot_dimension_numbers<[2], [1], [1], [2], [0, 0, 0, 1, 1, 2], [0], [0]>} : vector<4x8x16xf32>, vector<4x16x128xf32>, vector<4x8x128xf32> -> vector<4x8x128xf32>
    "tpu.trace_stop"() : () -> ()
    %c0_7 = arith.constant 0 : index
    %c0_8 = arith.constant 0 : index
    %c0_9 = arith.constant 0 : index
    %17 = vector.load %arg4[%c0_7, %c0_8, %c0_9] : memref<4x8x128xf32, #tpu.memory_space<vmem>>, vector<4x8x128xf32>
    tpu.vector_store %arg4[%c0_7, %c0_8, %c0_9], %16 {strides = array<i32>} : memref<4x8x128xf32, #tpu.memory_space<vmem>>, vector<4x8x128xf32>,
    return
  }
  func.func @transform_0(%arg0: i32) -> (i32, i32) {
    %c0_i32 = arith.constant 0 : i32
    %c0_i32_0 = arith.constant 0 : i32
    return %arg0, %c0_i32 : i32, i32
  }
  func.func @transform_1(%arg0: i32) -> (i32, i32, i32) {
    %c0_i32 = arith.constant 0 : i32
    %c0_i32_0 = arith.constant 0 : i32
    %c0_i32_1 = arith.constant 0 : i32
    return %arg0, %c0_i32, %c0_i32_0 : i32, i32, i32
  }
  func.func @transform_2(%arg0: i32) -> (i32, i32) {
    %c0_i32 = arith.constant 0 : i32
    %c0_i32_0 = arith.constant 0 : i32
    return %arg0, %c0_i32 : i32, i32
  }
  func.func @transform_3(%arg0: i32) -> (i32, i32, i32) {
    %c0_i32 = arith.constant 0 : i32
    %c0_i32_0 = arith.constant 0 : i32
    %c0_i32_1 = arith.constant 0 : i32
    return %arg0, %c0_i32, %c0_i32_0 : i32, i32, i32
  }
}

</mosaic_0001>

<llo_original>
// kernel: tpu_custom_call.1
$region0: #{tpu_custom_call.1}
  #allocation0 [shape = 'u32[]', space=smem, size = 0x4, offset = 0x4, fixed_abs, tag = 'smem constant byte address 0x4 - core index']
  #allocation1 [shape = 'u32[144,128]{1,0:T(1,128)}', space=vmem, size = 0x12000, scoped, tag = 'internal scratch']
  %s0 = inlined_call_operand.hbm [shape: s32[4,8], index: 0, kind: input, shape index: {}]
  %s1 = inlined_call_operand.hbm [shape: f32[4,16,128], index: 1, kind: input, shape index: {}]
  %s2 = inlined_call_operand.hbm [shape: f32[4,8], index: 2, kind: input, shape index: {}]
  %s3 = inlined_call_operand.hbm [shape: f32[4,8,128], index: 3, kind: output, shape index: {}]
  %s4 = sld [smem:[#allocation0]]
  $region34: #{tpu_custom_call.1} parent=0
    _
  %s6 = ssub.s32 1, %s4
  %s7 = scalar_select 0, %s6, %s4
  $region1: #{tpu_custom_call.1} parent=0
    #allocation2 [shape = 'u8[2048]{0}', space=vmem, size = 0x800, scoped, tag = 'input window, operand 0, single buffered']
    #allocation3 [shape = 's32[1]{0}', space=sflag, size = 0x4, scoped, tag = 'scoped memory for tpu_custom_call.1']
    #allocation4 [shape = 's32[1]{0}', space=sflag, size = 0x4, scoped, tag = 'scoped memory for tpu_custom_call.1']
    #allocation5 [shape = 'u8[32768]{0}', space=vmem, size = 0x8000, scoped, tag = 'input window, operand 1, single buffered']
    #allocation6 [shape = 's32[1]{0}', space=sflag, size = 0x4, scoped, tag = 'scoped memory for tpu_custom_call.1']
    #allocation7 [shape = 'u8[2048]{0}', space=vmem, size = 0x800, scoped, tag = 'input window, operand 2, single buffered']
    #allocation8 [shape = 'u8[16384]{0}', space=vmem, size = 0x4000, scoped, tag = 'output window, operand 0, single buffered']
    %8 = vsyncpa [#allocation3], 0
    %9 = vsyncpa [#allocation6], 0
    %10 = vsyncpa [#allocation4], 0
    // Predicated region
    $region2: #{tpu_custom_call.1} parent=1 // pred_check
      _
    $region3: #{tpu_custom_call.1} parent=1 // pred_check_branch
      %12 = sbr.rel (0) target = $region5
    $region4: #{tpu_custom_call.1} parent=1 // pred_region
      %s14 = ssub.s32 64, 64
      %15 = vsyncadd [#allocation3], %s14
      %s17 = sshll.u32 [#allocation2], 4
      %s18 = int_to_ptr.vmem [resolvable:$true] %s17
      %20 = dma.hbm_to_vmem [thread:$0]  %s0, 64, %s18, [#allocation3]
    $region5: #{tpu_custom_call.1} parent=1 // pred_fallthru
      _
    // Predicated region
    $region6: #{tpu_custom_call.1} parent=1 // pred_check
      _
    $region7: #{tpu_custom_call.1} parent=1 // pred_check_branch
      %22 = sbr.rel (0) target = $region9
    $region8: #{tpu_custom_call.1} parent=1 // pred_region
      %s24 = ssub.s32 1024, 1024
      %25 = vsyncadd [#allocation6], %s24
      %s26 = sshll.u32 [#allocation5], 4
      %s27 = int_to_ptr.vmem [resolvable:$true] %s26
      %32 = dma.hbm_to_vmem [thread:$0]  %s1, 1024, %s27, [#allocation6], 128, 128, 8
    $region9: #{tpu_custom_call.1} parent=1 // pred_fallthru
      _
    // Predicated region
    $region10: #{tpu_custom_call.1} parent=1 // pred_check
      _
    $region11: #{tpu_custom_call.1} parent=1 // pred_check_branch
      %34 = sbr.rel (0) target = $region13
    $region12: #{tpu_custom_call.1} parent=1 // pred_region
      %s36 = ssub.s32 64, 64
      %37 = vsyncadd [#allocation6], %s36
      %s39 = sshll.u32 [#allocation7], 4
      %s40 = int_to_ptr.vmem [resolvable:$true] %s39
      %42 = dma.hbm_to_vmem [thread:$0]  %s2, 64, %s40, [#allocation6]
    $region13: #{tpu_custom_call.1} parent=1 // pred_fallthru
      _
    // Predicated region
    $region14: #{tpu_custom_call.1} parent=1 // pred_check
      _
    $region15: #{tpu_custom_call.1} parent=1 // pred_check_branch
      %44 = sbr.rel (0) target = $region17
    $region16: #{tpu_custom_call.1} parent=1 // pred_region
      %45 = dma.done [#allocation3], 64
    $region17: #{tpu_custom_call.1} parent=1 // pred_fallthru
      _
    // Predicated region
    $region18: #{tpu_custom_call.1} parent=1 // pred_check
      _
    $region19: #{tpu_custom_call.1} parent=1 // pred_check_branch
      %47 = sbr.rel (0) target = $region21
    $region20: #{tpu_custom_call.1} parent=1 // pred_region
      %48 = dma.done [#allocation6], 1024
    $region21: #{tpu_custom_call.1} parent=1 // pred_fallthru
      _
    // Predicated region
    $region22: #{tpu_custom_call.1} parent=1 // pred_check
      _
    $region23: #{tpu_custom_call.1} parent=1 // pred_check_branch
      %50 = sbr.rel (0) target = $region25
    $region24: #{tpu_custom_call.1} parent=1 // pred_region
      %51 = dma.done [#allocation6], 64
    $region25: #{tpu_custom_call.1} parent=1 // pred_fallthru
      _
    %v52 = vld [vmem:[#allocation2] sm:$0xf]
    %vm53 = vcmp.gt.s32.totalorder %v52, 0
    %v54 = vsel %vm53, %v52, 0
    %vm55 = vcmp.lt.s32.totalorder %v54, 15
    %v56 = vsel %vm55, %v54, 15
    %v57 = vlaneseq
    %v58 = vand.u32 %v57, 127
    %v59 = vlaneseq
    %v60 = vshrl.u32 %v59, 7
    %v61 = vsub.s32 0, %v60
    %v62 = vrot.slane %v56, %v61
    %64 = vbcast.lane.b32.xlu0 %v62, 256
    %v65 = vpop.permute.xlu0 %64
    %v66 = vlaneseq
    %v67 = vshrl.u32 %v66, 7
    %v68 = vsub.s32 1, %v67
    %v69 = vrot.slane %v56, %v68
    %71 = vbcast.lane.b32.xlu0 %v69, 256
    %v72 = vpop.permute.xlu0 %71
    %v73 = vlaneseq
    %v74 = vshrl.u32 %v73, 7
    %v75 = vsub.s32 2, %v74
    %v76 = vrot.slane %v56, %v75
    %78 = vbcast.lane.b32.xlu0 %v76, 256
    %v79 = vpop.permute.xlu0 %78
    %v80 = vlaneseq
    %v81 = vshrl.u32 %v80, 7
    %v82 = vsub.s32 3, %v81
    %v83 = vrot.slane %v56, %v82
    %85 = vbcast.lane.b32.xlu0 %v83, 256
    %v86 = vpop.permute.xlu0 %85
    %vm87 = vcmp.eq.s32.totalorder %v58, %v65
    %vm88 = vcmp.eq.s32.totalorder %v58, %v72
    %vm89 = vcmp.eq.s32.totalorder %v58, %v79
    %vm90 = vcmp.eq.s32.totalorder %v58, %v86
    %v91 = vld [vmem:[#allocation7] sm:$0xf]
    %v92 = vlaneseq
    %v93 = vshrl.u32 %v92, 7
    %v94 = vsub.s32 0, %v93
    %v95 = vrot.slane %v91, %v94
    %97 = vbcast.lane.b32.xlu0 %v95, 256
    %v98 = vpop.permute.xlu0 %97
    %v99 = vlaneseq
    %v100 = vshrl.u32 %v99, 7
    %v101 = vsub.s32 1, %v100
    %v102 = vrot.slane %v91, %v101
    %104 = vbcast.lane.b32.xlu0 %v102, 256
    %v105 = vpop.permute.xlu0 %104
    %v106 = vlaneseq
    %v107 = vshrl.u32 %v106, 7
    %v108 = vsub.s32 2, %v107
    %v109 = vrot.slane %v91, %v108
    %111 = vbcast.lane.b32.xlu0 %v109, 256
    %v112 = vpop.permute.xlu0 %111
    %v113 = vlaneseq
    %v114 = vshrl.u32 %v113, 7
    %v115 = vsub.s32 3, %v114
    %v116 = vrot.slane %v91, %v115
    %118 = vbcast.lane.b32.xlu0 %v116, 256
    %v119 = vpop.permute.xlu0 %118
    %v120 = vsel %vm87, %v98, 0.0
    %v121 = vsel %vm88, %v105, 0.0
    %v122 = vsel %vm89, %v112, 0.0
    %v123 = vsel %vm90, %v119, 0.0
    %v124 = vld [vmem:[#allocation5] sm:$0xff]
    %v125 = vld [vmem:[#allocation5 + $0x8] sm:$0xff]
    %v126 = vld [vmem:[#allocation5 + $0x10] sm:$0xff]
    %v127 = vld [vmem:[#allocation5 + $0x18] sm:$0xff]
    %v128 = vld [vmem:[#allocation5 + $0x20] sm:$0xff]
    %v129 = vld [vmem:[#allocation5 + $0x28] sm:$0xff]
    %v130 = vld [vmem:[#allocation5 + $0x30] sm:$0xff]
    %v131 = vld [vmem:[#allocation5 + $0x38] sm:$0xff]
    %vm132 = vcmask 130048
    %v134 = vsel %vm132, %v120, 0
    %136 = vmatprep.subr.mxu0 0.0
    %137 = vmatpush1.msra.mxu0 0.0
    %138 = vmatprep.subr.mxu0 0.0
    %139 = vmatpush1.msra.mxu0 0.0
    %140 = vmatprep.subr.mxu0 0.0
    %141 = vmatpush1.msra.mxu0 0.0
    %142 = vmatprep.subr.mxu0 0.0
    %143 = vmatpush1.msra.mxu0 0.0
    %144 = vmatprep.subr.mxu0 0.0
    %145 = vmatpush1.msra.mxu0 0.0
    %146 = vmatprep.subr.mxu0 0.0
    %147 = vmatpush1.msra.mxu0 0.0
    %148 = vmatprep.subr.mxu0 0.0
    %149 = vmatpush1.msra.mxu0 0.0
    %150 = vmatprep.subr.mxu0 0.0
    %151 = vmatpush1.msra.mxu0 0.0
    %152 = vmatprep.subr.mxu0 0.0
    %153 = vmatpush1.msra.mxu0 0.0
    %154 = vmatprep.subr.mxu0 0.0
    %155 = vmatpush1.msra.mxu0 0.0
    %156 = vmatprep.subr.mxu0 0.0
    %157 = vmatpush1.msra.mxu0 0.0
    %158 = vmatprep.subr.mxu0 0.0
    %159 = vmatpush1.msra.mxu0 0.0
    %160 = vmatprep.subr.mxu0 0.0
    %161 = vmatpush1.msra.mxu0 0.0
    %162 = vmatprep.subr.mxu0 0.0
    %163 = vmatpush1.msra.mxu0 0.0
    %164 = vmatprep.subr.mxu0 0.0
    %165 = vmatpush1.msra.mxu0 %v125
    %166 = vmatprep.subr.mxu0 0.0
    %167 = vmatpush1.msra.mxu0 %v124
    %168 = vmatprep.subr.mxu0 0.0
    %169 = vmatpush2.msra.mxu0 0.0
    %170 = vmatprep.subr.mxu0 0.0
    %171 = vmatpush2.msra.mxu0 0.0
    %172 = vmatprep.subr.mxu0 0.0
    %173 = vmatpush2.msra.mxu0 0.0
    %174 = vmatprep.subr.mxu0 0.0
    %175 = vmatpush2.msra.mxu0 0.0
    %176 = vmatprep.subr.mxu0 0.0
    %177 = vmatpush2.msra.mxu0 0.0
    %178 = vmatprep.subr.mxu0 0.0
    %179 = vmatpush2.msra.mxu0 0.0
    %180 = vmatprep.subr.mxu0 0.0
    %181 = vmatpush2.msra.mxu0 0.0
    %182 = vmatprep.subr.mxu0 0.0
    %183 = vmatpush2.msra.mxu0 0.0
    %184 = vmatprep.subr.mxu0 0.0
    %185 = vmatpush2.msra.mxu0 0.0
    %186 = vmatprep.subr.mxu0 0.0
    %187 = vmatpush2.msra.mxu0 0.0
    %188 = vmatprep.subr.mxu0 0.0
    %189 = vmatpush2.msra.mxu0 0.0
    %190 = vmatprep.subr.mxu0 0.0
    %191 = vmatpush2.msra.mxu0 0.0
    %192 = vmatprep.subr.mxu0 0.0
    %193 = vmatpush2.msra.mxu0 0.0
    %194 = vmatprep.subr.mxu0 0.0
    %195 = vmatpush2.msra.mxu0 0.0
    %196 = vmatprep.subr.mxu0 0.0
    %197 = vmatpush2.msra.mxu0 0.0
    %198 = vmatprep.subr.mxu0 0.0
    %199 = vmatpush2.msra.mxu0 0.0
    %200 = vmatprep.mubr.f32.mxu0 0.0
    %201 = vmatmul.mubr.f32.gmra.mxu0 %v134
    %v202 = vpop.f32.mrf.mxu0
    %v203 = vadd.f32 0.0, %v202
    %v204 = vpop.f32.mrf.mxu0
    %205 = vdwg.mxu0
    %v207 = vsel %vm132, %v121, 0
    %209 = vmatprep.subr.mxu0 0.0
    %210 = vmatpush1.msra.mxu0 0.0
    %211 = vmatprep.subr.mxu0 0.0
    %212 = vmatpush1.msra.mxu0 0.0
    %213 = vmatprep.subr.mxu0 0.0
    %214 = vmatpush1.msra.mxu0 0.0
    %215 = vmatprep.subr.mxu0 0.0
    %216 = vmatpush1.msra.mxu0 0.0
    %217 = vmatprep.subr.mxu0 0.0
    %218 = vmatpush1.msra.mxu0 0.0
    %219 = vmatprep.subr.mxu0 0.0
    %220 = vmatpush1.msra.mxu0 0.0
    %221 = vmatprep.subr.mxu0 0.0
    %222 = vmatpush1.msra.mxu0 0.0
    %223 = vmatprep.subr.mxu0 0.0
    %224 = vmatpush1.msra.mxu0 0.0
    %225 = vmatprep.subr.mxu0 0.0
    %226 = vmatpush1.msra.mxu0 0.0
    %227 = vmatprep.subr.mxu0 0.0
    %228 = vmatpush1.msra.mxu0 0.0
    %229 = vmatprep.subr.mxu0 0.0
    %230 = vmatpush1.msra.mxu0 0.0
    %231 = vmatprep.subr.mxu0 0.0
    %232 = vmatpush1.msra.mxu0 0.0
    %233 = vmatprep.subr.mxu0 0.0
    %234 = vmatpush1.msra.mxu0 0.0
    %235 = vmatprep.subr.mxu0 0.0
    %236 = vmatpush1.msra.mxu0 0.0
    %237 = vmatprep.subr.mxu0 0.0
    %238 = vmatpush1.msra.mxu0 %v127
    %239 = vmatprep.subr.mxu0 0.0
    %240 = vmatpush1.msra.mxu0 %v126
    %241 = vmatprep.subr.mxu0 0.0
    %242 = vmatpush2.msra.mxu0 0.0
    %243 = vmatprep.subr.mxu0 0.0
    %244 = vmatpush2.msra.mxu0 0.0
    %245 = vmatprep.subr.mxu0 0.0
    %246 = vmatpush2.msra.mxu0 0.0
    %247 = vmatprep.subr.mxu0 0.0
    %248 = vmatpush2.msra.mxu0 0.0
    %249 = vmatprep.subr.mxu0 0.0
    %250 = vmatpush2.msra.mxu0 0.0
    %251 = vmatprep.subr.mxu0 0.0
    %252 = vmatpush2.msra.mxu0 0.0
    %253 = vmatprep.subr.mxu0 0.0
    %254 = vmatpush2.msra.mxu0 0.0
    %255 = vmatprep.subr.mxu0 0.0
    %256 = vmatpush2.msra.mxu0 0.0
    %257 = vmatprep.subr.mxu0 0.0
    %258 = vmatpush2.msra.mxu0 0.0
    %259 = vmatprep.subr.mxu0 0.0
    %260 = vmatpush2.msra.mxu0 0.0
    %261 = vmatprep.subr.mxu0 0.0
    %262 = vmatpush2.msra.mxu0 0.0
    %263 = vmatprep.subr.mxu0 0.0
    %264 = vmatpush2.msra.mxu0 0.0
    %265 = vmatprep.subr.mxu0 0.0
    %266 = vmatpush2.msra.mxu0 0.0
    %267 = vmatprep.subr.mxu0 0.0
    %268 = vmatpush2.msra.mxu0 0.0
    %269 = vmatprep.subr.mxu0 0.0
    %270 = vmatpush2.msra.mxu0 0.0
    %271 = vmatprep.subr.mxu0 0.0
    %272 = vmatpush2.msra.mxu0 0.0
    %273 = vmatprep.mubr.f32.mxu0 0.0
    %274 = vmatmul.mubr.f32.gmra.mxu0 %v207
    %v275 = vpop.f32.mrf.mxu0
    %v276 = vadd.f32 0.0, %v275
    %v277 = vpop.f32.mrf.mxu0
    %278 = vdwg.mxu0
    %v280 = vsel %vm132, %v122, 0
    %282 = vmatprep.subr.mxu0 0.0
    %283 = vmatpush1.msra.mxu0 0.0
    %284 = vmatprep.subr.mxu0 0.0
    %285 = vmatpush1.msra.mxu0 0.0
    %286 = vmatprep.subr.mxu0 0.0
    %287 = vmatpush1.msra.mxu0 0.0
    %288 = vmatprep.subr.mxu0 0.0
    %289 = vmatpush1.msra.mxu0 0.0
    %290 = vmatprep.subr.mxu0 0.0
    %291 = vmatpush1.msra.mxu0 0.0
    %292 = vmatprep.subr.mxu0 0.0
    %293 = vmatpush1.msra.mxu0 0.0
    %294 = vmatprep.subr.mxu0 0.0
    %295 = vmatpush1.msra.mxu0 0.0
    %296 = vmatprep.subr.mxu0 0.0
    %297 = vmatpush1.msra.mxu0 0.0
    %298 = vmatprep.subr.mxu0 0.0
    %299 = vmatpush1.msra.mxu0 0.0
    %300 = vmatprep.subr.mxu0 0.0
    %301 = vmatpush1.msra.mxu0 0.0
    %302 = vmatprep.subr.mxu0 0.0
    %303 = vmatpush1.msra.mxu0 0.0
    %304 = vmatprep.subr.mxu0 0.0
    %305 = vmatpush1.msra.mxu0 0.0
    %306 = vmatprep.subr.mxu0 0.0
    %307 = vmatpush1.msra.mxu0 0.0
    %308 = vmatprep.subr.mxu0 0.0
    %309 = vmatpush1.msra.mxu0 0.0
    %310 = vmatprep.subr.mxu0 0.0
    %311 = vmatpush1.msra.mxu0 %v129
    %312 = vmatprep.subr.mxu0 0.0
    %313 = vmatpush1.msra.mxu0 %v128
    %314 = vmatprep.subr.mxu0 0.0
    %315 = vmatpush2.msra.mxu0 0.0
    %316 = vmatprep.subr.mxu0 0.0
    %317 = vmatpush2.msra.mxu0 0.0
    %318 = vmatprep.subr.mxu0 0.0
    %319 = vmatpush2.msra.mxu0 0.0
    %320 = vmatprep.subr.mxu0 0.0
    %321 = vmatpush2.msra.mxu0 0.0
    %322 = vmatprep.subr.mxu0 0.0
    %323 = vmatpush2.msra.mxu0 0.0
    %324 = vmatprep.subr.mxu0 0.0
    %325 = vmatpush2.msra.mxu0 0.0
    %326 = vmatprep.subr.mxu0 0.0
    %327 = vmatpush2.msra.mxu0 0.0
    %328 = vmatprep.subr.mxu0 0.0
    %329 = vmatpush2.msra.mxu0 0.0
    %330 = vmatprep.subr.mxu0 0.0
    %331 = vmatpush2.msra.mxu0 0.0
    %332 = vmatprep.subr.mxu0 0.0
    %333 = vmatpush2.msra.mxu0 0.0
    %334 = vmatprep.subr.mxu0 0.0
    %335 = vmatpush2.msra.mxu0 0.0
    %336 = vmatprep.subr.mxu0 0.0
    %337 = vmatpush2.msra.mxu0 0.0
    %338 = vmatprep.subr.mxu0 0.0
    %339 = vmatpush2.msra.mxu0 0.0
    %340 = vmatprep.subr.mxu0 0.0
    %341 = vmatpush2.msra.mxu0 0.0
    %342 = vmatprep.subr.mxu0 0.0
    %343 = vmatpush2.msra.mxu0 0.0
    %344 = vmatprep.subr.mxu0 0.0
    %345 = vmatpush2.msra.mxu0 0.0
    %346 = vmatprep.mubr.f32.mxu0 0.0
    %347 = vmatmul.mubr.f32.gmra.mxu0 %v280
    %v348 = vpop.f32.mrf.mxu0
    %v349 = vadd.f32 0.0, %v348
    %v350 = vpop.f32.mrf.mxu0
    %351 = vdwg.mxu0
    %v353 = vsel %vm132, %v123, 0
    %355 = vmatprep.subr.mxu0 0.0
    %356 = vmatpush1.msra.mxu0 0.0
    %357 = vmatprep.subr.mxu0 0.0
    %358 = vmatpush1.msra.mxu0 0.0
    %359 = vmatprep.subr.mxu0 0.0
    %360 = vmatpush1.msra.mxu0 0.0
    %361 = vmatprep.subr.mxu0 0.0
    %362 = vmatpush1.msra.mxu0 0.0
    %363 = vmatprep.subr.mxu0 0.0
    %364 = vmatpush1.msra.mxu0 0.0
    %365 = vmatprep.subr.mxu0 0.0
    %366 = vmatpush1.msra.mxu0 0.0
    %367 = vmatprep.subr.mxu0 0.0
    %368 = vmatpush1.msra.mxu0 0.0
    %369 = vmatprep.subr.mxu0 0.0
    %370 = vmatpush1.msra.mxu0 0.0
    %371 = vmatprep.subr.mxu0 0.0
    %372 = vmatpush1.msra.mxu0 0.0
    %373 = vmatprep.subr.mxu0 0.0
    %374 = vmatpush1.msra.mxu0 0.0
    %375 = vmatprep.subr.mxu0 0.0
    %376 = vmatpush1.msra.mxu0 0.0
    %377 = vmatprep.subr.mxu0 0.0
    %378 = vmatpush1.msra.mxu0 0.0
    %379 = vmatprep.subr.mxu0 0.0
    %380 = vmatpush1.msra.mxu0 0.0
    %381 = vmatprep.subr.mxu0 0.0
    %382 = vmatpush1.msra.mxu0 0.0
    %383 = vmatprep.subr.mxu0 0.0
    %384 = vmatpush1.msra.mxu0 %v131
    %385 = vmatprep.subr.mxu0 0.0
    %386 = vmatpush1.msra.mxu0 %v130
    %387 = vmatprep.subr.mxu0 0.0
    %388 = vmatpush2.msra.mxu0 0.0
    %389 = vmatprep.subr.mxu0 0.0
    %390 = vmatpush2.msra.mxu0 0.0
    %391 = vmatprep.subr.mxu0 0.0
    %392 = vmatpush2.msra.mxu0 0.0
    %393 = vmatprep.subr.mxu0 0.0
    %394 = vmatpush2.msra.mxu0 0.0
    %395 = vmatprep.subr.mxu0 0.0
    %396 = vmatpush2.msra.mxu0 0.0
    %397 = vmatprep.subr.mxu0 0.0
    %398 = vmatpush2.msra.mxu0 0.0
    %399 = vmatprep.subr.mxu0 0.0
    %400 = vmatpush2.msra.mxu0 0.0
    %401 = vmatprep.subr.mxu0 0.0
    %402 = vmatpush2.msra.mxu0 0.0
    %403 = vmatprep.subr.mxu0 0.0
    %404 = vmatpush2.msra.mxu0 0.0
    %405 = vmatprep.subr.mxu0 0.0
    %406 = vmatpush2.msra.mxu0 0.0
    %407 = vmatprep.subr.mxu0 0.0
    %408 = vmatpush2.msra.mxu0 0.0
    %409 = vmatprep.subr.mxu0 0.0
    %410 = vmatpush2.msra.mxu0 0.0
    %411 = vmatprep.subr.mxu0 0.0
    %412 = vmatpush2.msra.mxu0 0.0
    %413 = vmatprep.subr.mxu0 0.0
    %414 = vmatpush2.msra.mxu0 0.0
    %415 = vmatprep.subr.mxu0 0.0
    %416 = vmatpush2.msra.mxu0 0.0
    %417 = vmatprep.subr.mxu0 0.0
    %418 = vmatpush2.msra.mxu0 0.0
    %419 = vmatprep.mubr.f32.mxu0 0.0
    %420 = vmatmul.mubr.f32.gmra.mxu0 %v353
    %v421 = vpop.f32.mrf.mxu0
    %v422 = vadd.f32 0.0, %v421
    %v423 = vpop.f32.mrf.mxu0
    %424 = vdwg.mxu0
    %425 = vst [vmem:[#allocation8] sm:$0xff] %v203
    %426 = vst [vmem:[#allocation8 + $0x8] sm:$0xff] %v276
    %427 = vst [vmem:[#allocation8 + $0x10] sm:$0xff] %v349
    %428 = vst [vmem:[#allocation8 + $0x18] sm:$0xff] %v422
    // Predicated region
    $region26: #{tpu_custom_call.1} parent=1 // pred_check
      _
    $region27: #{tpu_custom_call.1} parent=1 // pred_check_branch
      %430 = sbr.rel (0) target = $region29
    $region28: #{tpu_custom_call.1} parent=1 // pred_region
      %s432 = ssub.s32 512, 512
      %433 = vsyncadd [#allocation4], %s432
      %s434 = sshll.u32 [#allocation8], 4
      %s435 = int_to_ptr.vmem [resolvable:$true] %s434
      %440 = dma.vmem_to_hbm [thread:$0]  %s435, 512, %s3, [#allocation4], 128, 128, 8
    $region29: #{tpu_custom_call.1} parent=1 // pred_fallthru
      _
    // Predicated region
    $region30: #{tpu_custom_call.1} parent=1 // pred_check
      _
    $region31: #{tpu_custom_call.1} parent=1 // pred_check_branch
      %442 = sbr.rel (0) target = $region33
    $region32: #{tpu_custom_call.1} parent=1 // pred_region
      %443 = dma.done [#allocation4], 512
    $region33: #{tpu_custom_call.1} parent=1 // pred_fallthru
      _
    %444 = vsyncpa [#allocation3], 1
    %445 = vsyncpa [#allocation6], 1
    %446 = vsyncpa [#allocation4], 1

</llo_original>
